<compile_context>
chip_gen: v7x
topology: tpu7x:2x2x1
jax: 0.10.0
libtpu: 0.0.40
codegen_flags: <defaults>
</compile_context>

<pallas_src>
import jax
import jax.numpy as jnp
from jax.experimental import pallas as pl
from jax.experimental.pallas import tpu as pltpu

_LANE = 128
_SUBLANE = 8


def _round_up(x, m):
    return ((x + m - 1) // m) * m


def _cdiv(a, b):
    return (a + b - 1) // b


def _vmem_tile_bytes(rows, cols, itemsize):
    # VMEM buffers are laid out in (8, 128) tiles; account for that padding.
    return _round_up(max(rows, 1), _SUBLANE) * _round_up(max(cols, 1), _LANE) * itemsize


def _cls_kernel(x_ref, w_ref, b_ref, o_ref):
    # x_ref: (TM, D)  w_ref: (D, TC)  b_ref: (1, TC)  o_ref: (TM, TC)
    logits = jnp.dot(x_ref[...], w_ref[...], preferred_element_type=jnp.float32)
    logits = logits + b_ref[...].astype(jnp.float32)
    # Exact sigmoid: exp (EUP) + exact divide; plenty of slack in this HBM-bound kernel.
    o_ref[...] = (1.0 / (1.0 + jnp.exp(-logits))).astype(o_ref.dtype)


def classification_module(x, weight, bias, *, tile_m=None, tile_c=None):
    """sigmoid(x @ weight.T + bias).  x: [B, S, D], weight: [C, D], bias: [C] -> [B, S, C]."""
    B, S, D = x.shape
    C, Dw = weight.shape
    assert Dw == D, (Dw, D)
    M = B * S

    x_isz = jnp.dtype(x.dtype).itemsize
    o_dtype = x.dtype
    o_isz = jnp.dtype(o_dtype).itemsize
    w_isz = x_isz  # weight is cast to x.dtype below (bf16 in -> bf16 MXU path)

    # Budgets: 40 MiB of working set + 4 MiB headroom keeps us under v7x's 64 MiB
    # physical VMEM while still allowing ~1024-row tiles on 128 MiB parts.
    vmem_budget = 40 * 1024 * 1024
    resident_budget = 24 * 1024 * 1024

    # --- Class tiling: keep the whole [D, C] weight resident when it fits (the common
    # classification-head case), otherwise fall back to lane-dense class tiles. ---
    if tile_c is None:
        if C <= _LANE or 2 * _vmem_tile_bytes(D, C, w_isz) <= resident_budget:
            tile_c = C
        else:
            tile_c = 2 * _LANE
            if 2 * _vmem_tile_bytes(D, tile_c, w_isz) > resident_budget:
                tile_c = _LANE
            # TODO(synk): for pathologically large d_model even a 128-wide weight tile
            # can overflow VMEM; that would need a K-split (reduction grid axis).
    tile_c = min(tile_c, C)

    # Both copies of the constant-index weight/bias blocks (Pallas double-buffers
    # every input) are charged against the budget.
    resident = 2 * (_vmem_tile_bytes(D, tile_c, w_isz) + _vmem_tile_bytes(1, tile_c, 4))

    # --- Row tiling: as big as the budget allows, but keep >= ~4 grid steps so v7x
    # megacore can shard rows across both TensorCores and DMAs stay pipelined. ---
    if tile_m is None:
        per_row = 2 * (_round_up(D, _LANE) * x_isz + _round_up(tile_c, _LANE) * o_isz)
        tile_m = max(_SUBLANE, (vmem_budget - resident) // max(per_row, 1))
        tile_m = min(tile_m, 1024, _round_up(max(_cdiv(M, 4), 1), _SUBLANE))
    tile_m = max(_SUBLANE, (int(tile_m) // _SUBLANE) * _SUBLANE)

    nm = _cdiv(M, tile_m)   # ragged last tile handled by Pallas boundary masking
    nc = _cdiv(C, tile_c)

    needed = resident + 2 * (_vmem_tile_bytes(tile_m, D, x_isz)
                             + _vmem_tile_bytes(tile_m, tile_c, o_isz))
    vmem_limit = int(min(48 * 1024 * 1024, needed + 4 * 1024 * 1024))

    # Free view; no data movement.
    x2d = x.reshape(M, D)
    # Tiny one-off prep (C*D elements, no zero padding).  In production keep the
    # weight pre-transposed in the param pytree so even this disappears.
    w_t = weight.T.astype(x.dtype)
    b2d = bias.reshape(1, C).astype(jnp.float32)

    cost = pl.CostEstimate(
        flops=2 * M * D * C,
        transcendentals=M * C,  # one exp per output element
        bytes_accessed=int(M * D * x_isz + D * C * w_isz + C * 4 + M * C * o_isz),
    )

    out = pl.pallas_call(
        _cls_kernel,
        out_shape=jax.ShapeDtypeStruct((M, C), o_dtype),
        grid_spec=pltpu.PrefetchScalarGridSpec(
            num_scalar_prefetch=0,
            grid=(nm, nc),
            in_specs=[
                pl.BlockSpec((tile_m, D), lambda i, c: (i, 0)),     # streamed x rows
                pl.BlockSpec((D, tile_c), lambda i, c: (0, c)),     # resident weight^T (tile)
                pl.BlockSpec((1, tile_c), lambda i, c: (0, c)),     # resident bias (tile)
            ],
            out_specs=pl.BlockSpec((tile_m, tile_c), lambda i, c: (i, c)),
        ),
        compiler_params=pltpu.CompilerParams(
            dimension_semantics=("parallel", "parallel"),
            vmem_limit_bytes=vmem_limit,
        ),
        cost_estimate=cost,
    )(x2d, w_t, b2d)

    return out.reshape(B, S, C)


if __name__ == "__main__":
    # Shapes consistent with the module's forward: [batch, seq, d_model] -> [batch, seq, num_class]
    B, S, D, C = 2, 8, 32, 1

    key = jax.random.PRNGKey(0)
    kx, kw, kb = jax.random.split(key, 3)

    x = jax.random.normal(kx, (B, S, D), dtype=jnp.float32)
    # nn.init.normal_(fc.weight, std=0.02); nn.init.normal_(fc.bias, 0) -> N(0, 1)
    weight = 0.02 * jax.random.normal(kw, (C, D), dtype=jnp.float32)
    bias = jax.random.normal(kb, (C,), dtype=jnp.float32)

    pred = jax.block_until_ready(classification_module(x, weight, bias))
    ref = jax.nn.sigmoid(
        jnp.einsum("bsd,cd->bsc", x, weight, precision=jax.lax.Precision.HIGHEST) + bias)
    assert pred.shape == (B, S, C)
    # Exact sigmoid now; tolerance only covers MXU f32 (multi-bf16-pass) vs XLA HIGHEST.
    assert jnp.allclose(pred, ref, atol=5e-4, rtol=5e-4), float(jnp.max(jnp.abs(pred - ref)))

    # Second case: ragged M (150 rows -> masked last tile, no jnp.pad copy),
    # multi-step grid, C > 1, explicit tile_m override.
    B2, S2, D2, C2 = 3, 50, 256, 4
    k2 = jax.random.split(kb, 3)
    x2 = jax.random.normal(k2[0], (B2, S2, D2), dtype=jnp.float32)
    w2 = 0.02 * jax.random.normal(k2[1], (C2, D2), dtype=jnp.float32)
    b2 = jax.random.normal(k2[2], (C2,), dtype=jnp.float32)
    pred2 = jax.block_until_ready(classification_module(x2, w2, b2, tile_m=64))
    ref2 = jax.nn.sigmoid(
        jnp.einsum("bsd,cd->bsc", x2, w2, precision=jax.lax.Precision.HIGHEST) + b2)
    assert pred2.shape == (B2, S2, C2)
    assert jnp.allclose(pred2, ref2, atol=5e-4, rtol=5e-4), float(jnp.max(jnp.abs(pred2 - ref2)))

    print("KERNEL_OK")
</pallas_src>

<mosaic_0001>
module attributes {stable_mosaic.version = 11 : i64} {
  func.func @_cls_kernel(%arg0: i32, %arg1: i32, %arg2: memref<8x32xf32, #tpu.memory_space<vmem>>, %arg3: memref<32x1xf32, #tpu.memory_space<vmem>>, %arg4: memref<1x1xf32, #tpu.memory_space<vmem>>, %arg5: memref<8x1xf32, #tpu.memory_space<vmem>>) attributes {dimension_semantics = [#tpu.dimension_semantics<parallel>, #tpu.dimension_semantics<parallel>], iteration_bounds = array<i64: 2, 1>, scalar_prefetch = 0 : i64, scratch_operands = 0 : i64, tpu.core_type = #tpu.core_type<tc>, window_params = [{transform_indices = @transform_0, window_bounds = array<i64: 8, 32>}, {transform_indices = @transform_1, window_bounds = array<i64: 32, 1>}, {transform_indices = @transform_2, window_bounds = array<i64: 1, 1>}, {transform_indices = @transform_3, window_bounds = array<i64: 8, 1>}]} {
    %c0 = arith.constant 0 : index
    %c0_0 = arith.constant 0 : index
    %0 = vector.load %arg2[%c0, %c0_0] : memref<8x32xf32, #tpu.memory_space<vmem>>, vector<8x32xf32>
    %c0_1 = arith.constant 0 : index
    %c0_2 = arith.constant 0 : index
    %1 = vector.load %arg3[%c0_1, %c0_2] : memref<32x1xf32, #tpu.memory_space<vmem>>, vector<32x1xf32>
    %cst = arith.constant dense<0.000000e+00> : vector<8x1xf32>
    %2 = tpu.matmul %0, %1, %cst {dimension_numbers = #tpu.dot_dimension_numbers<[1], [0], [0], [1], [0, 0, 1, 1], [], []>} : vector<8x32xf32>, vector<32x1xf32>, vector<8x1xf32> -> vector<8x1xf32>
    %c0_3 = arith.constant 0 : index
    %c0_4 = arith.constant 0 : index
    %3 = vector.load %arg4[%c0_3, %c0_4] : memref<1x1xf32, #tpu.memory_space<vmem>>, vector<1x1xf32>
    %4 = vector.broadcast %3 : vector<1x1xf32> to vector<8x1xf32>
    %5 = arith.addf %2, %4 : vector<8x1xf32>
    %cst_5 = arith.constant 0.000000e+00 : f32
    %6 = vector.broadcast %cst_5 : f32 to vector<8x1xf32>
    %7 = arith.subf %6, %5 : vector<8x1xf32>
    %8 = math.exp %7 : vector<8x1xf32>
    %cst_6 = arith.constant 1.000000e+00 : f32
    %9 = vector.broadcast %cst_6 : f32 to vector<8x1xf32>
    %10 = arith.addf %9, %8 : vector<8x1xf32>
    %cst_7 = arith.constant 1.000000e+00 : f32
    %11 = vector.broadcast %cst_7 : f32 to vector<8x1xf32>
    %12 = arith.divf %11, %10 : vector<8x1xf32>
    %c0_8 = arith.constant 0 : index
    %c0_9 = arith.constant 0 : index
    %13 = vector.load %arg5[%c0_8, %c0_9] : memref<8x1xf32, #tpu.memory_space<vmem>>, vector<8x1xf32>
    tpu.vector_store %arg5[%c0_8, %c0_9], %12 {strides = array<i32>} : memref<8x1xf32, #tpu.memory_space<vmem>>, vector<8x1xf32>,
    return
  }
  func.func @transform_0(%arg0: i32, %arg1: i32) -> (i32, i32) {
    %c0_i32 = arith.constant 0 : i32
    %c0_i32_0 = arith.constant 0 : i32
    return %arg0, %c0_i32 : i32, i32
  }
  func.func @transform_1(%arg0: i32, %arg1: i32) -> (i32, i32) {
    %c0_i32 = arith.constant 0 : i32
    %c0_i32_0 = arith.constant 0 : i32
    return %c0_i32, %arg1 : i32, i32
  }
  func.func @transform_2(%arg0: i32, %arg1: i32) -> (i32, i32) {
    %c0_i32 = arith.constant 0 : i32
    %c0_i32_0 = arith.constant 0 : i32
    return %c0_i32, %arg1 : i32, i32
  }
  func.func @transform_3(%arg0: i32, %arg1: i32) -> (i32, i32) {
    %c0_i32 = arith.constant 0 : i32
    return %arg0, %arg1 : i32, i32
  }
}

</mosaic_0001>

<llo_original>
// kernel: tpu_custom_call.1
$region0: #{tpu_custom_call.1}
  #allocation0 [shape = 'u32[]', space=smem, size = 0x4, offset = 0x4, fixed_abs, tag = 'smem constant byte address 0x4 - core index']
  #allocation1 [shape = 'u32[144,128]{1,0:T(1,128)}', space=vmem, size = 0x12000, scoped, tag = 'internal scratch']
  #allocation2 [shape = 'f32[1,1]{1,0:T(1,128)S(1)}', space=vmem, size = 0x200, scoped, tag = 'scoped memory for tpu_custom_call.1']
  %s0 = inlined_call_operand.vmem [shape: f32[16,32], index: 0, kind: input, shape index: {}]
  %s1 = inlined_call_operand.vmem [shape: f32[32,1], index: 1, kind: input, shape index: {}]
  %s2 = inlined_call_operand.<no memory space> [shape: f32[1,1], index: 2, kind: input, shape index: {}]
  %s3 = inlined_call_operand.vmem [shape: f32[16,1], index: 3, kind: output, shape index: {}]
  %s4 = sld [smem:[#allocation0]]
  $region45: #{tpu_custom_call.1} parent=0
    _
  %s6 = ssub.s32 1, %s4
  %s7 = scalar_select 0, %s6, %s4
  %v8 = vstv %s2
  %9 = vst [vmem:[#allocation2] sm:$0x1] %v8
  loop: start=0, step=1, limit=4
  $region2: #{tpu_custom_call.1} parent=0 // loop_pre_header
    _
  $region3: #{tpu_custom_call.1} parent=0 // loop_header
    %s11 = sphi 0, %s15
    %p12 = scmp.ge.s32.totalorder %s11, 4
    %s18 = sphi 0, %s30
    %s19 = sphi 0, %s26
    %s20 = sphi 0, %s18
    %s21 = sphi 0, %s19
    %s22 = sphi 0, %s20
    %s23 = sphi 0, %s21
    %s33 = sphi 0, %s35
    %s36 = sphi 0, %s33
    %s37 = sphi 0, %s36
    %s53 = sphi 0, %s37
    %s59 = sphi 0, %s61
    %s62 = sphi 0, %s59
    %s63 = sphi 0, %s62
    %s79 = sphi 0, %s63
    %s85 = sphi 0, %s87
    %s88 = sphi 0, %s85
    %s89 = sphi 0, %s88
    %s105 = sphi 0, %s89
    %s113 = sphi 0, %s115
    %s116 = sphi 0, %s113
    %s117 = sphi 0, %s116
    %s133 = sphi 0, %s117
  $region4: #{tpu_custom_call.1} parent=0 // loop_header_branch
    %14 = sbr.rel (%p12) target = $region8
  $region5: #{tpu_custom_call.1} parent=0 // loop_body
    %s16 = ssub.s32 %s11, 1
    %s17 = ssub.s32 %s11, 2
    %s24 = sadd.s32 1, %s19
    %p25 = scmp.ge.s32.totalorder %s24, 1
    %s26 = scalar_select %p25, 0, %s24
    %s27 = sadd.s32 1, %s18
    %s28 = scalar_select %p25, %s27, %s18
    %p29 = scmp.ge.s32.totalorder %s28, 2
    %s30 = scalar_select %p29, 0, %s28
    %s31 = ssub.s32 %s18, %s30
    %p32 = scmp.eq.s32.totalorder %s31, 0
    %s34 = sadd.s32 %s33, 1
    %s35 = scalar_select %p32, %s33, %s34
    %p38 = pneg %p32
    %p39 = scmp.eq.s32.totalorder %s11, 1
    %p40 = por %p38, %p39
    %p41 = scmp.ne.s32.totalorder %s33, %s36
    %p42 = scmp.eq.s32.totalorder %s11, 0
    %p43 = por %p41, %p42
    %p44 = scmp.ne.s32.totalorder %s33, %s36
    %p45 = scmp.eq.s32.totalorder %s16, 1
    %p46 = por %p44, %p45
    %p47 = scmp.ne.s32.totalorder %s36, %s37
    %p48 = scmp.eq.s32.totalorder %s16, 0
    %p49 = por %p47, %p48
    %p50 = scmp.ne.s32.totalorder %s36, %s37
    %p51 = scmp.eq.s32.totalorder %s17, 1
    %p52 = por %p50, %p51
    %p54 = scmp.ne.s32.totalorder %s37, %s53
    %p55 = scmp.eq.s32.totalorder %s17, 0
    %p56 = por %p54, %p55
    %s57 = ssub.s32 %s19, %s26
    %p58 = scmp.eq.s32.totalorder %s57, 0
    %s60 = sadd.s32 %s59, 1
    %s61 = scalar_select %p58, %s59, %s60
    %p64 = pneg %p58
    %p65 = scmp.eq.s32.totalorder %s11, 1
    %p66 = por %p64, %p65
    %p67 = scmp.ne.s32.totalorder %s59, %s62
    %p68 = scmp.eq.s32.totalorder %s11, 0
    %p69 = por %p67, %p68
    %p70 = scmp.ne.s32.totalorder %s59, %s62
    %p71 = scmp.eq.s32.totalorder %s16, 1
    %p72 = por %p70, %p71
    %p73 = scmp.ne.s32.totalorder %s62, %s63
    %p74 = scmp.eq.s32.totalorder %s16, 0
    %p75 = por %p73, %p74
    %p76 = scmp.ne.s32.totalorder %s62, %s63
    %p77 = scmp.eq.s32.totalorder %s17, 1
    %p78 = por %p76, %p77
    %p80 = scmp.ne.s32.totalorder %s63, %s79
    %p81 = scmp.eq.s32.totalorder %s17, 0
    %p82 = por %p80, %p81
    %s83 = ssub.s32 %s19, %s26
    %p84 = scmp.eq.s32.totalorder %s83, 0
    %s86 = sadd.s32 %s85, 1
    %s87 = scalar_select %p84, %s85, %s86
    %p90 = pneg %p84
    %p91 = scmp.eq.s32.totalorder %s11, 1
    %p92 = por %p90, %p91
    %p93 = scmp.ne.s32.totalorder %s85, %s88
    %p94 = scmp.eq.s32.totalorder %s11, 0
    %p95 = por %p93, %p94
    %p96 = scmp.ne.s32.totalorder %s85, %s88
    %p97 = scmp.eq.s32.totalorder %s16, 1
    %p98 = por %p96, %p97
    %p99 = scmp.ne.s32.totalorder %s88, %s89
    %p100 = scmp.eq.s32.totalorder %s16, 0
    %p101 = por %p99, %p100
    %p102 = scmp.ne.s32.totalorder %s88, %s89
    %p103 = scmp.eq.s32.totalorder %s17, 1
    %p104 = por %p102, %p103
    %p106 = scmp.ne.s32.totalorder %s89, %s105
    %p107 = scmp.eq.s32.totalorder %s17, 0
    %p108 = por %p106, %p107
    %s109 = ssub.s32 %s18, %s30
    %s110 = ssub.s32 %s19, %s26
    %s111 = sor.u32 %s109, %s110
    %p112 = scmp.eq.s32.totalorder %s111, 0
    %s114 = sadd.s32 %s113, 1
    %s115 = scalar_select %p112, %s113, %s114
    %p118 = pneg %p112
    %p119 = scmp.eq.s32.totalorder %s11, 1
    %p120 = por %p118, %p119
    %p121 = scmp.ne.s32.totalorder %s113, %s116
    %p122 = scmp.eq.s32.totalorder %s11, 0
    %p123 = por %p121, %p122
    %p124 = scmp.ne.s32.totalorder %s113, %s116
    %p125 = scmp.eq.s32.totalorder %s16, 1
    %p126 = por %p124, %p125
    %p127 = scmp.ne.s32.totalorder %s116, %s117
    %p128 = scmp.eq.s32.totalorder %s16, 0
    %p129 = por %p127, %p128
    %p130 = scmp.ne.s32.totalorder %s116, %s117
    %p131 = scmp.eq.s32.totalorder %s17, 1
    %p132 = por %p130, %p131
    %p134 = scmp.ne.s32.totalorder %s117, %s133
    %p135 = scmp.eq.s32.totalorder %s17, 0
    %p136 = por %p134, %p135
    %p137 = scmp.le.s32.totalorder 1, %s11
    %p138 = scmp.lt.s32.totalorder %s11, 3
    %p139 = pnand %p137, %p138
    %p140 = pneg %p139
    // Predicated region
    $region9: #{tpu_custom_call.1} parent=5 // pred_check
      _
    $region10: #{tpu_custom_call.1} parent=5 // pred_check_branch
      %142 = sbr.rel (%p139) target = $region12
    $region11: #{tpu_custom_call.1} parent=5 // pred_region
      %s143 = ssub.s32 %s11, 1
      // Predicated region
      $region13: #{tpu_custom_call.1} parent=11 // pred_check
        %p144 = pneg %p75
      $region14: #{tpu_custom_call.1} parent=11 // pred_check_branch
        %146 = sbr.rel (%p144) target = $region16
      $region15: #{tpu_custom_call.1} parent=11 // pred_region
        %p147 = scmp.lt.s32.totalorder %s21, 0
        %s148 = scalar_select %p147, %s21, 0
        %s149 = smul.addr %s148, 8
        %s150 = scalar_lea.vmem %s1, %s149
      $region16: #{tpu_custom_call.1} parent=11 // pred_fallthru
        _
      // Predicated region
      $region17: #{tpu_custom_call.1} parent=11 // pred_check
        %p151 = pneg %p101
      $region18: #{tpu_custom_call.1} parent=11 // pred_check_branch
        %153 = sbr.rel (%p151) target = $region20
      $region19: #{tpu_custom_call.1} parent=11 // pred_region
        %p154 = scmp.lt.s32.totalorder %s21, 0
        %s155 = scalar_select %p154, %s21, 0
        %s156 = scalar_lea.vmem [#allocation2], %s155
      $region20: #{tpu_custom_call.1} parent=11 // pred_fallthru
        _
    $region12: #{tpu_custom_call.1} parent=5 // pred_fallthru
      _
    %p157 = scmp.lt.s32.totalorder %s11, 2
    // Predicated region
    $region21: #{tpu_custom_call.1} parent=5 // pred_check
      %p158 = pneg %p157
    $region22: #{tpu_custom_call.1} parent=5 // pred_check_branch
      %160 = sbr.rel (%p158) target = $region24
    $region23: #{tpu_custom_call.1} parent=5 // pred_region
      // Predicated region
      $region25: #{tpu_custom_call.1} parent=23 // pred_check
        %p161 = pneg %p43
      $region26: #{tpu_custom_call.1} parent=23 // pred_check_branch
        %163 = sbr.rel (%p161) target = $region28
      $region27: #{tpu_custom_call.1} parent=23 // pred_region
        %p164 = scmp.lt.s32.totalorder %s18, 1
        %s165 = scalar_select %p164, %s18, 1
        %s166 = smul.addr %s165, 8
        %s167 = scalar_lea.vmem %s0, %s166
      $region28: #{tpu_custom_call.1} parent=23 // pred_fallthru
        _
    $region24: #{tpu_custom_call.1} parent=5 // pred_fallthru
      _
    %p168 = scmp.le.s32.totalorder 1, %s11
    %p169 = scmp.lt.s32.totalorder %s11, 3
    %p170 = pnand %p168, %p169
    %p171 = pneg %p170
    // Predicated region
    $region29: #{tpu_custom_call.1} parent=5 // pred_check
      _
    $region30: #{tpu_custom_call.1} parent=5 // pred_check_branch
      %173 = sbr.rel (%p170) target = $region32
    $region31: #{tpu_custom_call.1} parent=5 // pred_region
      %s174 = ssub.s32 %s11, 1
      %p175 = scmp.lt.s32.totalorder %s20, 1
      %s176 = scalar_select %p175, %s20, 1
      %s177 = smul.addr %s176, 8
      %s178 = scalar_lea.vmem %s0, %s177
      %p179 = pneg %p49
      %p180 = pneg %p46
      %p181 = scmp.lt.s32.totalorder %s21, 0
      %s182 = scalar_select %p181, %s21, 0
      %s183 = smul.addr %s182, 8
      %s184 = scalar_lea.vmem %s1, %s183
      %p185 = pneg %p75
      %p186 = pneg %p72
      %p187 = scmp.lt.s32.totalorder %s21, 0
      %s188 = scalar_select %p187, %s21, 0
      %s189 = scalar_lea.vmem [#allocation2], %s188
      %p190 = pneg %p101
      %p191 = pneg %p98
      %p192 = pneg %p129
      %p193 = pneg %p126
      %p194 = scmp.lt.s32.totalorder %s20, 1
      %s195 = scalar_select %p194, %s20, 1
      %p196 = scmp.lt.s32.totalorder %s21, 0
      %s197 = scalar_select %p196, %s21, 0
      %s198 = sadd.s32 %s197, %s195
      %s199 = smul.addr %s198, 8
      %s200 = scalar_lea.vmem %s3, %s199
      %p201 = scmp.lt.s32.totalorder %s20, 1
      %s202 = scalar_select %p201, %s20, 1
      %s203 = smul.addr %s202, 8
      %s204 = scalar_lea.vmem %s0, %s203
      %p205 = scmp.lt.s32.totalorder %s21, 0
      %s206 = scalar_select %p205, %s21, 0
      %s207 = smul.addr %s206, 8
      %s208 = scalar_lea.vmem %s1, %s207
      %p209 = scmp.lt.s32.totalorder %s21, 0
      %s210 = scalar_select %p209, %s21, 0
      %s211 = scalar_lea.vmem [#allocation2], %s210
      %p212 = scmp.lt.s32.totalorder %s20, 1
      %s213 = scalar_select %p212, %s20, 1
      %p214 = scmp.lt.s32.totalorder %s21, 0
      %s215 = scalar_select %p214, %s21, 0
      %s216 = sadd.s32 %s215, %s213
      %s217 = smul.addr %s216, 8
      %s218 = scalar_lea.vmem %s3, %s217
      %v219 = vld [vmem:[%s204] sm:$0xff]
      %v220 = vld [vmem:[%s208] sm:$0xff]
      %v221 = vld [vmem:[%s208 + $0x8] sm:$0xff]
      %v222 = vld [vmem:[%s208 + $0x10] sm:$0xff]
      %v223 = vld [vmem:[%s208 + $0x18] sm:$0xff]
      %v224 = vld [vmem:[%s211] sm:$0x1]
      %v226 = vlaneseq
      %v227 = vshrl.u32 %v226, 7
      %v228 = vsub.s32 0, %v227
      %v229 = vrot.slane %v224, %v228
      %vm231 = vcmask 261120
      %v233 = vsel %vm231, %v219, 0
      %235 = vmatprep.subr.mxu0 0.0
      %236 = vmatpush1.msra.mxu0 %v220
      %237 = vmatprep.subr.mxu0 0.0
      %238 = vmatpush1.msra.mxu0 %v221
      %239 = vmatprep.subr.mxu0 0.0
      %240 = vmatpush1.msra.mxu0 %v222
      %241 = vmatprep.subr.mxu0 0.0
      %242 = vmatpush1.msra.mxu0 %v223
      %243 = vmatprep.subr.mxu0 0.0
      %244 = vmatpush1.msra.mxu0 0.0
      %245 = vmatprep.subr.mxu0 0.0
      %246 = vmatpush1.msra.mxu0 0.0
      %247 = vmatprep.subr.mxu0 0.0
      %248 = vmatpush1.msra.mxu0 0.0
      %249 = vmatprep.subr.mxu0 0.0
      %250 = vmatpush1.msra.mxu0 0.0
      %251 = vmatprep.subr.mxu0 0.0
      %252 = vmatpush1.msra.mxu0 0.0
      %253 = vmatprep.subr.mxu0 0.0
      %254 = vmatpush1.msra.mxu0 0.0
      %255 = vmatprep.subr.mxu0 0.0
      %256 = vmatpush1.msra.mxu0 0.0
      %257 = vmatprep.subr.mxu0 0.0
      %258 = vmatpush1.msra.mxu0 0.0
      %259 = vmatprep.subr.mxu0 0.0
      %260 = vmatpush1.msra.mxu0 0.0
      %261 = vmatprep.subr.mxu0 0.0
      %262 = vmatpush1.msra.mxu0 0.0
      %263 = vmatprep.subr.mxu0 0.0
      %264 = vmatpush1.msra.mxu0 0.0
      %265 = vmatprep.subr.mxu0 0.0
      %266 = vmatpush1.msra.mxu0 0.0
      %267 = vmatprep.subr.mxu0 0.0
      %268 = vmatpush1.msra.mxu0 0.0
      %269 = vmatprep.subr.mxu0 0.0
      %270 = vmatpush1.msra.mxu0 0.0
      %271 = vmatprep.subr.mxu0 0.0
      %272 = vmatpush1.msra.mxu0 0.0
      %273 = vmatprep.subr.mxu0 0.0
      %274 = vmatpush1.msra.mxu0 0.0
      %275 = vmatprep.subr.mxu0 0.0
      %276 = vmatpush1.msra.mxu0 0.0
      %277 = vmatprep.subr.mxu0 0.0
      %278 = vmatpush1.msra.mxu0 0.0
      %279 = vmatprep.subr.mxu0 0.0
      %280 = vmatpush1.msra.mxu0 0.0
      %281 = vmatprep.subr.mxu0 0.0
      %282 = vmatpush1.msra.mxu0 0.0
      %283 = vmatprep.subr.mxu0 0.0
      %284 = vmatpush1.msra.mxu0 0.0
      %285 = vmatprep.subr.mxu0 0.0
      %286 = vmatpush1.msra.mxu0 0.0
      %287 = vmatprep.subr.mxu0 0.0
      %288 = vmatpush1.msra.mxu0 0.0
      %289 = vmatprep.subr.mxu0 0.0
      %290 = vmatpush1.msra.mxu0 0.0
      %291 = vmatprep.subr.mxu0 0.0
      %292 = vmatpush1.msra.mxu0 0.0
      %293 = vmatprep.subr.mxu0 0.0
      %294 = vmatpush1.msra.mxu0 0.0
      %295 = vmatprep.subr.mxu0 0.0
      %296 = vmatpush1.msra.mxu0 0.0
      %297 = vmatprep.subr.mxu0 0.0
      %298 = vmatpush1.msra.mxu0 0.0
      %299 = vmatprep.mubr.f32.mxu0 0.0
      %300 = vmatmul.mubr.f32.gmra.mrb[0].mxu0 %v233
      %v301 = vpop.f32.mrb[0].mxu0
      %v302 = vadd.f32 %v229, %v301
      %v303 = vpop.f32.mrb[0].mxu0
      %304 = vdwg.mxu0
      %v305 = vsub.f32 0.0, %v302
      %v306 = vmul.f32 %v305, 1.442695
      %v307 = vpow.pop %v306
      %v308 = vadd.f32 %v307, 1.0
      %v309 = vrcp.pop %v308
      %v310 = vmul.f32 1.0, %v309
      %vm311 = vcmask 7168
      %312 = vst.msk [vmem:[%s218] sm:$0xff] %vm311, %v310
      %p313 = scmp.lt.s32.totalorder %s20, 1
      %s314 = scalar_select %p313, %s20, 1
      %p315 = scmp.lt.s32.totalorder %s21, 0
      %s316 = scalar_select %p315, %s21, 0
      %s317 = sadd.s32 %s316, %s314
      %s318 = smul.addr %s317, 8
      %s319 = scalar_lea.vmem %s3, %s318
      // Predicated region
      $region33: #{tpu_custom_call.1} parent=31 // pred_check
        %p320 = pneg %p126
      $region34: #{tpu_custom_call.1} parent=31 // pred_check_branch
        %322 = sbr.rel (%p320) target = $region36
      $region35: #{tpu_custom_call.1} parent=31 // pred_region
        _
      $region36: #{tpu_custom_call.1} parent=31 // pred_fallthru
        _
    $region32: #{tpu_custom_call.1} parent=5 // pred_fallthru
      _
    %p323 = scmp.le.s32.totalorder 2, %s11
    // Predicated region
    $region37: #{tpu_custom_call.1} parent=5 // pred_check
      %p324 = pneg %p323
    $region38: #{tpu_custom_call.1} parent=5 // pred_check_branch
      %326 = sbr.rel (%p324) target = $region40
    $region39: #{tpu_custom_call.1} parent=5 // pred_region
      %s327 = ssub.s32 %s11, 2
      // Predicated region
      $region41: #{tpu_custom_call.1} parent=39 // pred_check
        %p328 = pneg %p132
      $region42: #{tpu_custom_call.1} parent=39 // pred_check_branch
        %330 = sbr.rel (%p328) target = $region44
      $region43: #{tpu_custom_call.1} parent=39 // pred_region
        %p331 = scmp.lt.s32.totalorder %s22, 1
        %s332 = scalar_select %p331, %s22, 1
        %p333 = scmp.lt.s32.totalorder %s23, 0
        %s334 = scalar_select %p333, %s23, 0
        %s335 = sadd.s32 %s334, %s332
        %s336 = smul.addr %s335, 8
        %s337 = scalar_lea.vmem %s3, %s336
      $region44: #{tpu_custom_call.1} parent=39 // pred_fallthru
        _
    $region40: #{tpu_custom_call.1} parent=5 // pred_fallthru
      _
  $region6: #{tpu_custom_call.1} parent=0 // loop_footer
    %s15 = sadd.s32 1, %s11
  $region7: #{tpu_custom_call.1} parent=0 // loop_footer_branch
    %10 = sbr.rel target = $region3
  $region8: #{tpu_custom_call.1} parent=0 // loop_exit
    _

</llo_original>
